<compile_context>
chip_gen: v7x
topology: tpu7x:2x2x1
jax: 0.10.0
libtpu: 0.0.40
codegen_flags: <defaults>
</compile_context>

<pallas_src>
import jax
import jax.numpy as jnp
from jax.experimental import pallas as pl
from jax.experimental.pallas import tpu as pltpu


# ----------------------------------------------------------------------------- #
# Kernel body: the entire forward pass of DummyPreProcess is a copy.
# ----------------------------------------------------------------------------- #
def _copy_kernel(src_ref, dst_ref):
    dst_ref[...] = src_ref[...]


# ----------------------------------------------------------------------------- #
# Layout helper: lane-dense (rows, 128) view only when it actually pays off.
# ----------------------------------------------------------------------------- #
def _lane_dense_view(a):
    """Return (view, needs_reshape_back).

    Reshape to (rows, 128) only when size is a positive multiple of 128 — that is
    the only case where the lane-dense trick turns masked vst.msk into full-width
    vst.  Otherwise keep the original shape (whole-array block; layout is
    irrelevant for a few hundred bytes, and (1, N) would waste 7/8 of each vreg).
    """
    n = a.size
    if n >= 128 and n % 128 == 0:
        return a.reshape(n // 128, 128), True
    if a.ndim == 0:
        return a.reshape(1, 1), True
    return a, False


def _identity_copy_pallas(a, donate=False):
    """Copy one array through an explicit Pallas kernel boundary."""
    if a.size == 0:
        return a  # nothing to move; a kernel would be pure overhead

    view, reshaped = _lane_dense_view(a)
    nbytes = int(view.size) * view.dtype.itemsize
    cost = pl.CostEstimate(flops=0, transcendentals=0, bytes_accessed=2 * nbytes)
    aliases = {0: 0} if donate else {}

    rows = view.shape[0] if view.ndim == 2 else 0
    block_rows = 1024  # multiple of 8; 512 KiB f32 tile at 128 lanes

    if reshaped and view.ndim == 2 and rows > block_rows:
        # Production-sized tiled copy: 1-D row grid over the (rows, 128) view.
        lanes = view.shape[1]
        tile_bytes = block_rows * lanes * view.dtype.itemsize
        # in + out, each double-buffered, plus 1 MiB headroom; clamp to sane bounds
        # (fits v5e's 16 MiB scoped default and v7x's 64 MiB physical VMEM).
        vmem_budget = min(max(4 * tile_bytes + (1 << 20), 4 << 20), 48 << 20)
        out = pl.pallas_call(
            _copy_kernel,
            out_shape=jax.ShapeDtypeStruct(view.shape, view.dtype),
            grid=(pl.cdiv(rows, block_rows),),
            in_specs=[pl.BlockSpec((block_rows, lanes), lambda i: (i, 0))],
            out_specs=pl.BlockSpec((block_rows, lanes), lambda i: (i, 0)),
            compiler_params=pltpu.CompilerParams(
                dimension_semantics=("parallel",),  # shards across v7x's 2 TCs
                vmem_limit_bytes=vmem_budget,
            ),
            cost_estimate=cost,
            input_output_aliases=aliases,
        )(view)
    else:
        # Small / irregular arrays: single whole-array block, no grid, no scratch.
        out = pl.pallas_call(
            _copy_kernel,
            out_shape=jax.ShapeDtypeStruct(view.shape, view.dtype),
            cost_estimate=cost,
            input_output_aliases=aliases,
        )(view)

    return out.reshape(a.shape) if reshaped else out


# ----------------------------------------------------------------------------- #
# Forward-pass entry points.
# ----------------------------------------------------------------------------- #
def dummy_preprocess_forward(x, state):
    """The real DummyPreProcess.forward: identity — no kernel, no data movement."""
    return x, state


def dummy_preprocess_forward_barrier(x, state):
    """Identity with an explicit scheduling boundary, zero HBM traffic.

    Preferred over a Pallas identity kernel for 'fusion barrier' use-cases.
    """
    return jax.lax.optimization_barrier((x, state))


def dummy_preprocess_forward_pallas(x, state, donate=False):
    """Identity through an explicit Pallas kernel boundary (profiling only).

    Set donate=True ONLY if the caller donates x/state (e.g.
    jax.jit(..., donate_argnums=(0, 1))); aliasing without donation adds a
    defensive copy and increases HBM traffic. With donation the writeback is
    elided, but the caller must not reuse the original buffers afterwards.
    """
    return (_identity_copy_pallas(x, donate=donate),
            _identity_copy_pallas(state, donate=donate))


class DummyPreProcess:
    """JAX/Pallas port of the PyTorch DummyPreProcess module.

    The PyTorch module has no parameters (output_dim is just metadata). The
    default call path is a direct pass-through (the correct, zero-cost
    implementation). mode="barrier" inserts a free scheduling boundary;
    mode="pallas" forces an explicit kernel boundary.
    """

    def __init__(self, dim: int = 4, mode: str = "passthrough"):
        self.output_dim = dim
        self.mode = mode

    def __call__(self, x, state):
        if self.mode == "pallas":
            return dummy_preprocess_forward_pallas(x, state)
        if self.mode == "barrier":
            return dummy_preprocess_forward_barrier(x, state)
        return dummy_preprocess_forward(x, state)


if __name__ == "__main__":
    key = jax.random.PRNGKey(0)
    kx, ks, kb = jax.random.split(key, 3)

    # Small shapes consistent with a conv-style preprocessor input:
    # x in NCHW, state as a (batch, hidden) recurrent-style state.
    x = jax.random.normal(kx, (2, 4, 16, 16), dtype=jnp.float32)      # 2048 elems
    state = jax.random.normal(ks, (2, 32), dtype=jnp.float32)         # 64 elems

    # 1) Default (recommended) path: identity with zero data movement.
    module = DummyPreProcess(dim=4)
    x_out, state_out = module(x, state)

    # 2) Scheduling-boundary path (no kernel, no traffic).
    x_b, state_b = dummy_preprocess_forward_barrier(x, state)

    # 3) Explicit Pallas kernel boundary (small whole-array-block path).
    x_k, state_k = dummy_preprocess_forward_pallas(x, state)

    # 4) Exercise the production tiled (gridded) copy path on a modest array:
    #    2048 rows x 128 lanes f32 = 1 MiB -> grid of 2 x (1024, 128) blocks.
    big = jax.random.normal(kb, (2048, 128), dtype=jnp.float32)
    big_k = _identity_copy_pallas(big)

    jax.block_until_ready((x_out, state_out, x_b, state_b, x_k, state_k, big_k))

    # Verify exact identity semantics on every path.
    for xo, so in ((x_out, state_out), (x_b, state_b), (x_k, state_k)):
        assert xo.shape == x.shape and xo.dtype == x.dtype
        assert so.shape == state.shape and so.dtype == state.dtype
        assert bool(jnp.all(xo == x)) and bool(jnp.all(so == state))
    assert big_k.shape == big.shape and bool(jnp.all(big_k == big))

    print("KERNEL_OK")
</pallas_src>

<mosaic_0001>
module attributes {stable_mosaic.version = 11 : i64} {
  func.func @_copy_kernel(%arg0: memref<16x128xf32, #tpu.memory_space<vmem>>, %arg1: memref<16x128xf32, #tpu.memory_space<vmem>>) attributes {dimension_semantics = [], scalar_prefetch = 0 : i64, scratch_operands = 0 : i64, tpu.core_type = #tpu.core_type<tc>} {
    %c0 = arith.constant 0 : index
    %c0_0 = arith.constant 0 : index
    %0 = vector.load %arg0[%c0, %c0_0] : memref<16x128xf32, #tpu.memory_space<vmem>>, vector<16x128xf32>
    %c0_1 = arith.constant 0 : index
    %c0_2 = arith.constant 0 : index
    %1 = vector.load %arg1[%c0_1, %c0_2] : memref<16x128xf32, #tpu.memory_space<vmem>>, vector<16x128xf32>
    tpu.vector_store %arg1[%c0_1, %c0_2], %0 {strides = array<i32>} : memref<16x128xf32, #tpu.memory_space<vmem>>, vector<16x128xf32>,
    return
  }
}

</mosaic_0001>

<llo_original>
// kernel: tpu_custom_call.1
$region0: #{tpu_custom_call.1}
  #allocation0 [shape = 'u32[]', space=smem, size = 0x4, offset = 0x4, fixed_abs, tag = 'smem constant byte address 0x4 - core index']
  #allocation1 [shape = 'u32[144,128]{1,0:T(1,128)}', space=vmem, size = 0x12000, scoped, tag = 'internal scratch']
  %s0 = inlined_call_operand.hbm [shape: f32[16,128], index: 0, kind: input, shape index: {}]
  %s1 = inlined_call_operand.hbm [shape: f32[16,128], index: 1, kind: output, shape index: {}]
  %s2 = sld [smem:[#allocation0]]
  $region18: #{tpu_custom_call.1} parent=0
    _
  %s4 = ssub.s32 1, %s2
  %s5 = scalar_select 0, %s4, %s2
  $region1: #{tpu_custom_call.1} parent=0
    #allocation2 [shape = 'u8[8192]{0}', space=vmem, size = 0x2000, scoped, tag = 'input window, operand 0, single buffered']
    #allocation3 [shape = 's32[1]{0}', space=sflag, size = 0x4, scoped, tag = 'scoped memory for tpu_custom_call.1']
    #allocation4 [shape = 's32[1]{0}', space=sflag, size = 0x4, scoped, tag = 'scoped memory for tpu_custom_call.1']
    #allocation5 [shape = 'u8[8192]{0}', space=vmem, size = 0x2000, scoped, tag = 'output window, operand 0, single buffered']
    %6 = vsyncpa [#allocation3], 0
    %7 = vsyncpa [#allocation4], 0
    // Predicated region
    $region2: #{tpu_custom_call.1} parent=1 // pred_check
      _
    $region3: #{tpu_custom_call.1} parent=1 // pred_check_branch
      %9 = sbr.rel (0) target = $region5
    $region4: #{tpu_custom_call.1} parent=1 // pred_region
      %s11 = ssub.s32 256, 256
      %12 = vsyncadd [#allocation3], %s11
      %s13 = sshll.u32 [#allocation2], 4
      %s14 = int_to_ptr.vmem [resolvable:$true] %s13
      %19 = dma.hbm_to_vmem [thread:$0]  %s0, 256, %s14, [#allocation3], 128, 128, 8
    $region5: #{tpu_custom_call.1} parent=1 // pred_fallthru
      _
    // Predicated region
    $region6: #{tpu_custom_call.1} parent=1 // pred_check
      _
    $region7: #{tpu_custom_call.1} parent=1 // pred_check_branch
      %21 = sbr.rel (0) target = $region9
    $region8: #{tpu_custom_call.1} parent=1 // pred_region
      %22 = dma.done [#allocation3], 256
    $region9: #{tpu_custom_call.1} parent=1 // pred_fallthru
      _
    %v23 = vld [vmem:[#allocation2] sm:$0xff]
    %v24 = vld [vmem:[#allocation2 + $0x8] sm:$0xff]
    %25 = vst [vmem:[#allocation5] sm:$0xff] %v23
    %26 = vst [vmem:[#allocation5 + $0x8] sm:$0xff] %v24
    // Predicated region
    $region10: #{tpu_custom_call.1} parent=1 // pred_check
      _
    $region11: #{tpu_custom_call.1} parent=1 // pred_check_branch
      %28 = sbr.rel (0) target = $region13
    $region12: #{tpu_custom_call.1} parent=1 // pred_region
      %s30 = ssub.s32 256, 256
      %31 = vsyncadd [#allocation4], %s30
      %s32 = sshll.u32 [#allocation5], 4
      %s33 = int_to_ptr.vmem [resolvable:$true] %s32
      %38 = dma.vmem_to_hbm [thread:$0]  %s33, 256, %s1, [#allocation4], 128, 128, 8
    $region13: #{tpu_custom_call.1} parent=1 // pred_fallthru
      _
    // Predicated region
    $region14: #{tpu_custom_call.1} parent=1 // pred_check
      _
    $region15: #{tpu_custom_call.1} parent=1 // pred_check_branch
      %40 = sbr.rel (0) target = $region17
    $region16: #{tpu_custom_call.1} parent=1 // pred_region
      %41 = dma.done [#allocation4], 256
    $region17: #{tpu_custom_call.1} parent=1 // pred_fallthru
      _
    %42 = vsyncpa [#allocation3], 1
    %43 = vsyncpa [#allocation4], 1

</llo_original>
